<compile_context>
chip_gen: v7x
topology: tpu7x:2x2x1
jax: 0.10.0
libtpu: 0.0.40
codegen_flags: <defaults>
</compile_context>

<pallas_src>
import math

import jax
import jax.numpy as jnp
from jax.experimental import pallas as pl
from jax.experimental.pallas import tpu as pltpu


_SUBLANE = 8
# 2 MiB per block: input + output, double-buffered => ~8 MiB of VMEM.
# Inside v5e's 16 MiB scoped default; large enough that the ~0.35 us/step grid
# overhead is <10% of each block's DMA even at v7x's ~3.2 TB/s HBM.
_TARGET_BLOCK_BYTES = 2 * 1024 * 1024


def _copy_kernel(x_ref, o_ref):
    o_ref[...] = x_ref[...]


def _choose_2d_layout(total, n, trailing):
    """Lane-dense 2D view (rows, cols) of the flat data.

    Prefer wide, 128-multiple columns (unmasked, lane-dense vst).  If the
    element count is not a multiple of 128, fall back to (n, trailing): the
    last dim is then the full array extent, which bypasses the (8,128)
    block constraint, so no padding is ever needed.
    """
    for cols in (1024, 512, 256, 128):
        if total % cols == 0:
            return total // cols, cols
    return n, trailing


def _tile_rows_for(rows, cols, itemsize):
    """Rows per block: ~2 MiB, multiple of 8 sublanes (or the full extent)."""
    tile = _TARGET_BLOCK_BYTES // max(1, cols * itemsize)
    tile = max(_SUBLANE, (tile // _SUBLANE) * _SUBLANE)
    if tile >= rows:
        # Whole array fits in one block.  If it is big enough, still split it
        # in two so v7x's second TensorCore gets work on the "parallel" axis.
        if rows >= 2 * _SUBLANE:
            half = (rows + 1) // 2
            half = ((half + _SUBLANE - 1) // _SUBLANE) * _SUBLANE
            if half < rows:
                return half
        return rows  # full-extent block — always a legal block shape
    return tile


def reshape_pallas(x, reshape_dim):
    """Equivalent of torch `x.view(-1, *reshape_dim)`.

    Materializes the result with a tiled, lane-dense Pallas copy kernel; all
    shape changes around the copy are metadata-only reshapes.
    """
    total = x.size
    trailing = math.prod(reshape_dim)
    assert total % trailing == 0, "incompatible reshape_dim for input size"
    n = total // trailing
    out_shape = (n, *reshape_dim)

    itemsize = jnp.dtype(x.dtype).itemsize
    rows, cols = _choose_2d_layout(total, n, trailing)
    tile_rows = _tile_rows_for(rows, cols, itemsize)
    grid = (pl.cdiv(rows, tile_rows),)  # partial last block masked by Pallas

    x2d = x.reshape(rows, cols)  # metadata-only on a contiguous array

    out2d = pl.pallas_call(
        _copy_kernel,
        out_shape=jax.ShapeDtypeStruct((rows, cols), x.dtype),
        grid=grid,
        in_specs=[pl.BlockSpec((tile_rows, cols), lambda i: (i, 0))],
        out_specs=pl.BlockSpec((tile_rows, cols), lambda i: (i, 0)),
        compiler_params=pltpu.CompilerParams(
            dimension_semantics=("parallel",),
        ),
        cost_estimate=pl.CostEstimate(
            flops=0, transcendentals=0, bytes_accessed=2 * x.nbytes),
    )(x2d)

    return out2d.reshape(out_shape)  # metadata-only


if __name__ == "__main__":
    key = jax.random.PRNGKey(0)
    # small CNN-style input, NCHW as in PyTorch
    x = jax.random.normal(key, (2, 4, 16, 16), dtype=jnp.float32)

    # module config: Reshape(reshape_dim=(4, 16, 16))  ->  view(-1, 4, 16, 16)
    reshape_dim = (4, 16, 16)
    ref = x.reshape(-1, *reshape_dim)
    out = jax.block_until_ready(reshape_pallas(x, reshape_dim))
    assert out.shape == ref.shape, (out.shape, ref.shape)
    assert out.dtype == ref.dtype
    assert bool(jnp.array_equal(out, ref))

    # a different target shape through the same kernel
    ref2 = x.reshape(-1, 16, 64)
    out2 = jax.block_until_ready(reshape_pallas(x, (16, 64)))
    assert out2.shape == ref2.shape and bool(jnp.array_equal(out2, ref2))

    # bf16
    xb = x.astype(jnp.bfloat16)
    refb = xb.reshape(-1, *reshape_dim)
    outb = jax.block_until_ready(reshape_pallas(xb, reshape_dim))
    assert outb.dtype == refb.dtype and bool(jnp.array_equal(outb, refb))

    # element count not a multiple of 128 -> full-extent-last-dim layout,
    # no padding, no post-slice
    xo = jax.random.normal(jax.random.PRNGKey(1), (6, 5, 7), dtype=jnp.float32)
    refo = xo.reshape(-1, 5, 7)
    outo = jax.block_until_ready(reshape_pallas(xo, (5, 7)))
    assert outo.shape == refo.shape and bool(jnp.array_equal(outo, refo))

    print("KERNEL_OK")
</pallas_src>

<mosaic_0001>
module attributes {stable_mosaic.version = 11 : i64} {
  func.func @_copy_kernel(%arg0: i32, %arg1: memref<2x1024xf32, #tpu.memory_space<vmem>>, %arg2: memref<2x1024xf32, #tpu.memory_space<vmem>>) attributes {dimension_semantics = [#tpu.dimension_semantics<parallel>], iteration_bounds = array<i64: 1>, scalar_prefetch = 0 : i64, scratch_operands = 0 : i64, tpu.core_type = #tpu.core_type<tc>, window_params = [{transform_indices = @transform_0, window_bounds = array<i64: 2, 1024>}, {transform_indices = @transform_1, window_bounds = array<i64: 2, 1024>}]} {
    %c0 = arith.constant 0 : index
    %c0_0 = arith.constant 0 : index
    %0 = vector.load %arg1[%c0, %c0_0] : memref<2x1024xf32, #tpu.memory_space<vmem>>, vector<2x1024xf32>
    %c0_1 = arith.constant 0 : index
    %c0_2 = arith.constant 0 : index
    %1 = vector.load %arg2[%c0_1, %c0_2] : memref<2x1024xf32, #tpu.memory_space<vmem>>, vector<2x1024xf32>
    tpu.vector_store %arg2[%c0_1, %c0_2], %0 {strides = array<i32>} : memref<2x1024xf32, #tpu.memory_space<vmem>>, vector<2x1024xf32>,
    return
  }
  func.func @transform_0(%arg0: i32) -> (i32, i32) {
    %c0_i32 = arith.constant 0 : i32
    %c0_i32_0 = arith.constant 0 : i32
    return %arg0, %c0_i32 : i32, i32
  }
  func.func @transform_1(%arg0: i32) -> (i32, i32) {
    %c0_i32 = arith.constant 0 : i32
    %c0_i32_0 = arith.constant 0 : i32
    return %arg0, %c0_i32 : i32, i32
  }
}

</mosaic_0001>

<llo_original>
// kernel: tpu_custom_call.1
$region0: #{tpu_custom_call.1}
  #allocation0 [shape = 'u32[]', space=smem, size = 0x4, offset = 0x4, fixed_abs, tag = 'smem constant byte address 0x4 - core index']
  #allocation1 [shape = 'u32[144,128]{1,0:T(1,128)}', space=vmem, size = 0x12000, scoped, tag = 'internal scratch']
  %s0 = inlined_call_operand.hbm [shape: f32[2,1024], index: 0, kind: input, shape index: {}]
  %s1 = inlined_call_operand.hbm [shape: f32[2,1024], index: 1, kind: output, shape index: {}]
  %s2 = sld [smem:[#allocation0]]
  $region18: #{tpu_custom_call.1} parent=0
    _
  %s4 = ssub.s32 1, %s2
  %s5 = scalar_select 0, %s4, %s2
  $region1: #{tpu_custom_call.1} parent=0
    #allocation2 [shape = 'u8[8192]{0}', space=vmem, size = 0x2000, scoped, tag = 'input window, operand 0, single buffered']
    #allocation3 [shape = 's32[1]{0}', space=sflag, size = 0x4, scoped, tag = 'scoped memory for tpu_custom_call.1']
    #allocation4 [shape = 's32[1]{0}', space=sflag, size = 0x4, scoped, tag = 'scoped memory for tpu_custom_call.1']
    #allocation5 [shape = 'u8[8192]{0}', space=vmem, size = 0x2000, scoped, tag = 'output window, operand 0, single buffered']
    %6 = vsyncpa [#allocation3], 0
    %7 = vsyncpa [#allocation4], 0
    // Predicated region
    $region2: #{tpu_custom_call.1} parent=1 // pred_check
      _
    $region3: #{tpu_custom_call.1} parent=1 // pred_check_branch
      %9 = sbr.rel (0) target = $region5
    $region4: #{tpu_custom_call.1} parent=1 // pred_region
      %s11 = ssub.s32 256, 256
      %12 = vsyncadd [#allocation3], %s11
      %s14 = sshll.u32 [#allocation2], 4
      %s15 = int_to_ptr.vmem [resolvable:$true] %s14
      %17 = dma.hbm_to_vmem [thread:$0]  %s0, 256, %s15, [#allocation3]
    $region5: #{tpu_custom_call.1} parent=1 // pred_fallthru
      _
    // Predicated region
    $region6: #{tpu_custom_call.1} parent=1 // pred_check
      _
    $region7: #{tpu_custom_call.1} parent=1 // pred_check_branch
      %19 = sbr.rel (0) target = $region9
    $region8: #{tpu_custom_call.1} parent=1 // pred_region
      %20 = dma.done [#allocation3], 256
    $region9: #{tpu_custom_call.1} parent=1 // pred_fallthru
      _
    %v21 = vld [vmem:[#allocation2] sm:$0xff]
    %v22 = vld [vmem:[#allocation2 + $0x8] sm:$0xff]
    %23 = vst [vmem:[#allocation5] sm:$0xff] %v21
    %24 = vst [vmem:[#allocation5 + $0x8] sm:$0xff] %v22
    // Predicated region
    $region10: #{tpu_custom_call.1} parent=1 // pred_check
      _
    $region11: #{tpu_custom_call.1} parent=1 // pred_check_branch
      %26 = sbr.rel (0) target = $region13
    $region12: #{tpu_custom_call.1} parent=1 // pred_region
      %s28 = ssub.s32 256, 256
      %29 = vsyncadd [#allocation4], %s28
      %s31 = sshll.u32 [#allocation5], 4
      %s32 = int_to_ptr.vmem [resolvable:$true] %s31
      %34 = dma.vmem_to_hbm [thread:$0]  %s32, 256, %s1, [#allocation4]
    $region13: #{tpu_custom_call.1} parent=1 // pred_fallthru
      _
    // Predicated region
    $region14: #{tpu_custom_call.1} parent=1 // pred_check
      _
    $region15: #{tpu_custom_call.1} parent=1 // pred_check_branch
      %36 = sbr.rel (0) target = $region17
    $region16: #{tpu_custom_call.1} parent=1 // pred_region
      %37 = dma.done [#allocation4], 256
    $region17: #{tpu_custom_call.1} parent=1 // pred_fallthru
      _
    %38 = vsyncpa [#allocation3], 1
    %39 = vsyncpa [#allocation4], 1

</llo_original>
